<compile_context>
chip_gen: v7x
topology: tpu7x:2x2x1
jax: 0.10.0
libtpu: 0.0.40
codegen_flags: <defaults>
</compile_context>

<pallas_src>
import functools

import jax
import jax.numpy as jnp
from jax.experimental import pallas as pl
from jax.experimental.pallas import tpu as pltpu

_LANE = 128
_TARGET_BLOCK_BYTES = 2 << 20  # ~2 MiB per block buffer (4 bufs worst case = 8 MiB)


def _neg_scale_kernel(g_ref, o_ref, *, neg_alpha):
    # Pure VPU elementwise work; compute in f32 so alpha is not quantized for
    # bf16/fp8 gradients, then cast back to the gradient dtype.
    o_ref[...] = (g_ref[...].astype(jnp.float32) * neg_alpha).astype(o_ref.dtype)


def _run_neg_scale(g, alpha):
    """grad * (-alpha) as a Pallas kernel over a lane-dense 2-D slab."""
    neg_alpha = -float(alpha)
    orig_shape, orig_dtype, n = g.shape, g.dtype, g.size
    itemsize = jnp.dtype(orig_dtype).itemsize
    if n == 0:
        return g

    flat = g.reshape(-1)

    # Pick the widest lane-dense last dim (multiple of 128) dividing the size.
    width = None
    for cand in (2048, 1024, 512, 256, _LANE):
        if n % cand == 0:
            width = cand
            break

    padded = False
    if width is None:
        # Size not a multiple of 128.
        if n * itemsize <= _TARGET_BLOCK_BYTES:
            # Small ragged array: a single full-extent block (block shape ==
            # full array dims) is tile-legal — no host-side padding copy.
            g2d = flat.reshape(1, n)
            out2d = pl.pallas_call(
                functools.partial(_neg_scale_kernel, neg_alpha=neg_alpha),
                out_shape=jax.ShapeDtypeStruct(g2d.shape, orig_dtype),
                input_output_aliases={0: 0},  # donate the gradient buffer
                compiler_params=pltpu.CompilerParams(vmem_limit_bytes=32 << 20),
            )(g2d)
            return out2d.reshape(orig_shape)
        # Rare: large AND not a multiple of 128 — pad the tail only.
        # TODO(synk): replace with a masked final-tile store to avoid the copy.
        pad = (-n) % _LANE
        flat = jnp.concatenate([flat, jnp.zeros((pad,), orig_dtype)])
        width = _LANE
        padded = True

    rows = flat.size // width
    g2d = flat.reshape(rows, width)

    # Block sizing: ~2 MiB per buffer; worst case (double-buffered in + out)
    # is 8 MiB, well inside the 32 MiB scoped-VMEM limit we request below.
    # Rows a multiple of 32 keeps the same path unmasked for bf16/fp8 grads.
    if rows * width * itemsize <= _TARGET_BLOCK_BYTES:
        tile_r = rows  # full-extent block: always tile-legal
    else:
        tile_r = max(32, (_TARGET_BLOCK_BYTES // (width * itemsize)) // 32 * 32)
        tile_r = min(tile_r, rows)

    grid = (pl.cdiv(rows, tile_r),)  # ragged last block is masked by Pallas

    out2d = pl.pallas_call(
        functools.partial(_neg_scale_kernel, neg_alpha=neg_alpha),
        out_shape=jax.ShapeDtypeStruct(g2d.shape, orig_dtype),
        grid=grid,
        in_specs=[pl.BlockSpec((tile_r, width), lambda i: (i, 0))],
        out_specs=pl.BlockSpec((tile_r, width), lambda i: (i, 0)),
        input_output_aliases={0: 0},  # donate the gradient buffer
        compiler_params=pltpu.CompilerParams(
            dimension_semantics=("parallel",),
            vmem_limit_bytes=32 << 20),
        cost_estimate=pl.CostEstimate(
            flops=n, transcendentals=0, bytes_accessed=2 * n * itemsize),
    )(g2d)

    out_flat = out2d.reshape(-1)
    if padded:
        out_flat = out_flat[:n]
    return out_flat.reshape(orig_shape)


@functools.partial(jax.custom_vjp, nondiff_argnums=(1,))
def grl(x, alpha=1.0):
    # Forward is a pure identity — no kernel, no HBM traffic.
    return x


def _grl_fwd(x, alpha):
    return x, None


def _grl_bwd(alpha, _, g):
    return (_run_neg_scale(g, alpha),)


grl.defvjp(_grl_fwd, _grl_bwd)


class GRL:
    """JAX/Pallas equivalent of the PyTorch GRL module."""

    def __init__(self, alpha=1.0):
        self.alpha = float(alpha)

    def __call__(self, x):
        return grl(x, self.alpha)


if __name__ == "__main__":
    key = jax.random.PRNGKey(0)
    x = jax.random.normal(key, (2, 4, 16, 16), dtype=jnp.float32)

    # Forward: exact identity.
    mod = GRL(alpha=1.0)
    y = mod(x)
    jax.block_until_ready(y)
    assert y.shape == x.shape and y.dtype == x.dtype
    assert bool(jnp.all(y == x))

    # Backward (runs the Pallas kernel): grad of sum(grl(x, a)) == -a.
    g = jax.grad(lambda t: jnp.sum(grl(t, 2.0)))(x)
    jax.block_until_ready(g)
    assert bool(jnp.allclose(g, -2.0))

    # bf16 gradient path: alpha stays f32 inside the kernel.
    xb = x.astype(jnp.bfloat16)
    gb = jax.grad(lambda t: jnp.sum(grl(t, 0.5).astype(jnp.float32)))(xb)
    jax.block_until_ready(gb)
    assert gb.dtype == jnp.bfloat16
    assert bool(jnp.allclose(gb.astype(jnp.float32), -0.5, atol=1e-2))

    # Ragged-size path (size % 128 != 0): single full-extent block, no pad copy.
    xr = jax.random.normal(key, (3, 5, 7), dtype=jnp.float32)
    gr = jax.grad(lambda t: jnp.sum(grl(t, 3.0)))(xr)
    jax.block_until_ready(gr)
    assert gr.shape == xr.shape
    assert bool(jnp.allclose(gr, -3.0))

    print("KERNEL_OK")
</pallas_src>

<mosaic_0001>
module attributes {stable_mosaic.version = 11 : i64} {
  func.func @_neg_scale_kernel(%arg0: i32, %arg1: memref<1x2048xf32, #tpu.memory_space<vmem>>, %arg2: memref<1x2048xf32, #tpu.memory_space<vmem>>) attributes {dimension_semantics = [#tpu.dimension_semantics<parallel>], iteration_bounds = array<i64: 1>, scalar_prefetch = 0 : i64, scratch_operands = 0 : i64, tpu.core_type = #tpu.core_type<tc>, window_params = [{transform_indices = @transform_0, window_bounds = array<i64: 1, 2048>}, {transform_indices = @transform_1, window_bounds = array<i64: 1, 2048>}]} {
    %c0 = arith.constant 0 : index
    %c0_0 = arith.constant 0 : index
    %0 = vector.load %arg1[%c0, %c0_0] : memref<1x2048xf32, #tpu.memory_space<vmem>>, vector<1x2048xf32>
    %cst = arith.constant -2.000000e+00 : f32
    %1 = vector.broadcast %cst : f32 to vector<1x2048xf32>
    %2 = arith.mulf %0, %1 : vector<1x2048xf32>
    %c0_1 = arith.constant 0 : index
    %c0_2 = arith.constant 0 : index
    %3 = vector.load %arg2[%c0_1, %c0_2] : memref<1x2048xf32, #tpu.memory_space<vmem>>, vector<1x2048xf32>
    tpu.vector_store %arg2[%c0_1, %c0_2], %2 {strides = array<i32>} : memref<1x2048xf32, #tpu.memory_space<vmem>>, vector<1x2048xf32>,
    return
  }
  func.func @transform_0(%arg0: i32) -> (i32, i32) {
    %c0_i32 = arith.constant 0 : i32
    %c0_i32_0 = arith.constant 0 : i32
    return %arg0, %c0_i32 : i32, i32
  }
  func.func @transform_1(%arg0: i32) -> (i32, i32) {
    %c0_i32 = arith.constant 0 : i32
    %c0_i32_0 = arith.constant 0 : i32
    return %arg0, %c0_i32 : i32, i32
  }
}

</mosaic_0001>

<llo_original>
// kernel: tpu_custom_call.1
$region0: #{tpu_custom_call.1}
  #allocation0 [shape = 'u32[]', space=smem, size = 0x4, offset = 0x4, fixed_abs, tag = 'smem constant byte address 0x4 - core index']
  #allocation1 [shape = 'u32[144,128]{1,0:T(1,128)}', space=vmem, size = 0x12000, scoped, tag = 'internal scratch']
  %s0 = inlined_call_operand.hbm [shape: f32[1,2048], index: 0, kind: input, shape index: {}, may-alias: {0,1}]
  %s1 = inlined_call_operand.hbm [shape: f32[1,2048], index: 1, kind: output, shape index: {}, may-alias: {0,1}]
  %s2 = sld [smem:[#allocation0]]
  $region18: #{tpu_custom_call.1} parent=0
    _
  %s4 = ssub.s32 1, %s2
  %s5 = scalar_select 0, %s4, %s2
  $region1: #{tpu_custom_call.1} parent=0
    #allocation2 [shape = 'u8[8192]{0}', space=vmem, size = 0x2000, scoped, tag = 'input window, operand 0, single buffered']
    #allocation3 [shape = 's32[1]{0}', space=sflag, size = 0x4, scoped, tag = 'scoped memory for tpu_custom_call.1']
    #allocation4 [shape = 's32[1]{0}', space=sflag, size = 0x4, scoped, tag = 'scoped memory for tpu_custom_call.1']
    #allocation5 [shape = 'u8[8192]{0}', space=vmem, size = 0x2000, scoped, tag = 'output window, operand 0, single buffered']
    %6 = vsyncpa [#allocation3], 0
    %7 = vsyncpa [#allocation4], 0
    // Predicated region
    $region2: #{tpu_custom_call.1} parent=1 // pred_check
      _
    $region3: #{tpu_custom_call.1} parent=1 // pred_check_branch
      %9 = sbr.rel (0) target = $region5
    $region4: #{tpu_custom_call.1} parent=1 // pred_region
      %s11 = ssub.s32 256, 256
      %12 = vsyncadd [#allocation3], %s11
      %s14 = sshll.u32 [#allocation2], 4
      %s15 = int_to_ptr.vmem [resolvable:$true] %s14
      %17 = dma.hbm_to_vmem [thread:$0]  %s0, 256, %s15, [#allocation3]
    $region5: #{tpu_custom_call.1} parent=1 // pred_fallthru
      _
    // Predicated region
    $region6: #{tpu_custom_call.1} parent=1 // pred_check
      _
    $region7: #{tpu_custom_call.1} parent=1 // pred_check_branch
      %19 = sbr.rel (0) target = $region9
    $region8: #{tpu_custom_call.1} parent=1 // pred_region
      %20 = dma.done [#allocation3], 256
    $region9: #{tpu_custom_call.1} parent=1 // pred_fallthru
      _
    %v21 = vld [vmem:[#allocation2] sm:$0xff]
    %v22 = vld [vmem:[#allocation2 + $0x8] sm:$0xff]
    %v23 = vmul.f32 %v21, -2.0
    %v24 = vmul.f32 %v22, -2.0
    %25 = vst [vmem:[#allocation5] sm:$0xff] %v23
    %26 = vst [vmem:[#allocation5 + $0x8] sm:$0xff] %v24
    // Predicated region
    $region10: #{tpu_custom_call.1} parent=1 // pred_check
      _
    $region11: #{tpu_custom_call.1} parent=1 // pred_check_branch
      %28 = sbr.rel (0) target = $region13
    $region12: #{tpu_custom_call.1} parent=1 // pred_region
      %s30 = ssub.s32 256, 256
      %31 = vsyncadd [#allocation4], %s30
      %s33 = sshll.u32 [#allocation5], 4
      %s34 = int_to_ptr.vmem [resolvable:$true] %s33
      %36 = dma.vmem_to_hbm [thread:$0]  %s34, 256, %s1, [#allocation4]
    $region13: #{tpu_custom_call.1} parent=1 // pred_fallthru
      _
    // Predicated region
    $region14: #{tpu_custom_call.1} parent=1 // pred_check
      _
    $region15: #{tpu_custom_call.1} parent=1 // pred_check_branch
      %38 = sbr.rel (0) target = $region17
    $region16: #{tpu_custom_call.1} parent=1 // pred_region
      %39 = dma.done [#allocation4], 256
    $region17: #{tpu_custom_call.1} parent=1 // pred_fallthru
      _
    %40 = vsyncpa [#allocation3], 1
    %41 = vsyncpa [#allocation4], 1

</llo_original>
